<compile_context>
chip_gen: v6e
topology: v6e:2x2x1
jax: 0.10.0
libtpu: 0.0.40
codegen_flags: <defaults>
</compile_context>

<pallas_src>
import math

import jax
import jax.numpy as jnp
from jax.experimental import pallas as pl
from jax.experimental.pallas import tpu as pltpu

_LANES = 128


# --------------------------------------------------------------------------- #
# Kernels
# --------------------------------------------------------------------------- #
def _div_div_kernel(a_ref, b_ref, o_ref):
    # c = a / b ; out = c / c   (keeps torch float-div semantics: 0/0 -> NaN)
    c = a_ref[...] / b_ref[...]
    o_ref[...] = c / c


def _div_div_scalar_b_kernel(b_ref, a_ref, o_ref):
    # b is a 1-element tensor kept in SMEM: c = a / b ; out = c / c
    c = a_ref[...].astype(jnp.float32) / b_ref[0]
    o_ref[...] = (c / c).astype(o_ref.dtype)


def _square_scale_kernel(inv_ref, a_ref, o_ref):
    # out = (a * a) * (1 / b)  — reciprocal hoisted to the wrapper, math in f32.
    a = a_ref[...].astype(jnp.float32)
    o_ref[...] = ((a * a) * inv_ref[0]).astype(o_ref.dtype)


# --------------------------------------------------------------------------- #
# Slab / tiling helpers
# --------------------------------------------------------------------------- #
def _round_up(x, m):
    return (x + m - 1) // m * m


def _slab_params(n, dtype):
    """Pick (block_rows, total_rows) for a lane-dense (rows, 128) slab."""
    itemsize = jnp.dtype(dtype).itemsize
    sub = 8 * max(1, 4 // itemsize)                     # 8 f32 / 16 bf16 / 32 int8
    rows = _round_up(max(1, -(-n // _LANES)), sub)      # pad rows to sublane mult
    target_rows = max(sub, (1 << 20) // (_LANES * itemsize))   # ~1 MiB per block
    block_rows = min(target_rows, rows)                 # multiple of `sub`
    total_rows = _round_up(rows, block_rows)            # all blocks full
    return block_rows, total_rows


def _to_slab(x, total_rows, pad_value):
    flat = jnp.ravel(x)
    pad = total_rows * _LANES - flat.size
    if pad:
        flat = jnp.pad(flat, (0, pad), constant_values=pad_value)
    return flat.reshape(total_rows, _LANES)


def _run_elementwise(kernel, smem_args, slab_args, out_dtype, block_rows, total_rows):
    grid = (total_rows // block_rows,)
    slab_spec = pl.BlockSpec((block_rows, _LANES), lambda i: (i, 0))
    in_specs = (
        [pl.BlockSpec(memory_space=pltpu.MemorySpace.SMEM)] * len(smem_args)
        + [slab_spec] * len(slab_args)
    )
    return pl.pallas_call(
        kernel,
        out_shape=jax.ShapeDtypeStruct((total_rows, _LANES), out_dtype),
        grid=grid,
        in_specs=in_specs,
        out_specs=slab_spec,
        compiler_params=pltpu.CompilerParams(dimension_semantics=("parallel",)),
    )(*smem_args, *slab_args)


# --------------------------------------------------------------------------- #
# SimpleDivModule.forward
# --------------------------------------------------------------------------- #
def simple_div(a, b):
    """Pallas forward of SimpleDivModule.  The `b.size() == torch.Size([])`
    branch maps to `b.ndim == 0` and is resolved at trace time."""
    if b.ndim == 0:
        # (a * a) / b.item()
        out_dtype = a.dtype if jnp.issubdtype(a.dtype, jnp.floating) else jnp.float32
        n = a.size
        block_rows, total_rows = _slab_params(n, out_dtype)
        a2d = _to_slab(a, total_rows, 0.0)
        inv = (1.0 / b.astype(jnp.float32)).reshape(1)          # hoisted reciprocal
        out = _run_elementwise(_square_scale_kernel, [inv], [a2d],
                               out_dtype, block_rows, total_rows)
        return out.reshape(-1)[:n].reshape(a.shape)

    # tensor branch: c = a / b ; return c / c
    out_shape = jnp.broadcast_shapes(a.shape, b.shape)
    out_dtype = jnp.result_type(a.dtype, b.dtype)
    if not jnp.issubdtype(out_dtype, jnp.floating):
        out_dtype = jnp.float32
    n = math.prod(out_shape)
    block_rows, total_rows = _slab_params(n, out_dtype)

    if b.size == 1 and a.shape == out_shape:
        # 1-element b stays in SMEM — no materialized broadcast of b.
        a2d = _to_slab(a.astype(out_dtype), total_rows, 1.0)
        s = b.reshape(1).astype(jnp.float32)
        out = _run_elementwise(_div_div_scalar_b_kernel, [s], [a2d],
                               out_dtype, block_rows, total_rows)
    else:
        # Equal shapes need no broadcast (broadcast_to/astype are no-ops then).
        # TODO(synk): express per-channel/per-row broadcasts of b via the
        # BlockSpec index_map instead of materializing the broadcast.
        a_full = jnp.broadcast_to(a, out_shape).astype(out_dtype)
        b_full = jnp.broadcast_to(b, out_shape).astype(out_dtype)
        a2d = _to_slab(a_full, total_rows, 1.0)   # pad with 1 -> 1/1 = 1 in pad region
        b2d = _to_slab(b_full, total_rows, 1.0)
        out = _run_elementwise(_div_div_kernel, [], [a2d, b2d],
                               out_dtype, block_rows, total_rows)
    return out.reshape(-1)[:n].reshape(out_shape)


# --------------------------------------------------------------------------- #
# Test harness
# --------------------------------------------------------------------------- #
if __name__ == "__main__":
    key = jax.random.PRNGKey(0)
    ka, kb = jax.random.split(key)

    # --- tensor-tensor branch: NCHW-like [2, 4, 16, 16] -----------------------
    a = jax.random.normal(ka, (2, 4, 16, 16), dtype=jnp.float32)
    b = jnp.abs(jax.random.normal(kb, (2, 4, 16, 16), dtype=jnp.float32)) + 0.5
    # Plant a zero so the intentional 0/0 -> NaN semantics of c/c is checked.
    a = a.at[0, 0, 0, 0].set(0.0)

    out = jax.block_until_ready(simple_div(a, b))
    c_ref = a / b
    ref = c_ref / c_ref
    assert out.shape == ref.shape and out.dtype == ref.dtype
    assert bool(jnp.isnan(out[0, 0, 0, 0]))
    assert jnp.allclose(out, ref, rtol=1e-6, atol=1e-6, equal_nan=True)

    # --- 0-dim scalar b branch: (a * a) / b.item() ----------------------------
    b_scalar = jnp.float32(3.0)
    out_s = jax.block_until_ready(simple_div(a, b_scalar))
    ref_s = (a * a) / b_scalar
    assert jnp.allclose(out_s, ref_s, rtol=1e-5, atol=1e-6)

    # --- 1-element tensor b (tensor branch, SMEM path, no broadcast copy) -----
    b_one = jnp.full((1,), 2.0, dtype=jnp.float32)
    out_1 = jax.block_until_ready(simple_div(a, b_one))
    c1 = a / b_one
    ref_1 = c1 / c1
    assert jnp.allclose(out_1, ref_1, rtol=1e-5, atol=1e-6, equal_nan=True)

    # --- non-128-divisible size exercises the pad-and-slice path --------------
    a_odd = jax.random.normal(ka, (3, 5, 7), dtype=jnp.float32)
    b_odd = jnp.abs(jax.random.normal(kb, (3, 5, 7), dtype=jnp.float32)) + 0.5
    out_o = jax.block_until_ready(simple_div(a_odd, b_odd))
    ref_o = (a_odd / b_odd) / (a_odd / b_odd)
    assert jnp.allclose(out_o, ref_o, rtol=1e-6, atol=1e-6)

    print("KERNEL_OK")
</pallas_src>

<mosaic_0001>
module attributes {stable_mosaic.version = 11 : i64} {
  func.func @_div_div_kernel(%arg0: i32, %arg1: memref<16x128xf32, #tpu.memory_space<vmem>>, %arg2: memref<16x128xf32, #tpu.memory_space<vmem>>, %arg3: memref<16x128xf32, #tpu.memory_space<vmem>>) attributes {dimension_semantics = [#tpu.dimension_semantics<parallel>], iteration_bounds = array<i64: 1>, scalar_prefetch = 0 : i64, scratch_operands = 0 : i64, tpu.core_type = #tpu.core_type<tc>, window_params = [{transform_indices = @transform_0, window_bounds = array<i64: 16, 128>}, {transform_indices = @transform_1, window_bounds = array<i64: 16, 128>}, {transform_indices = @transform_2, window_bounds = array<i64: 16, 128>}]} {
    %c0 = arith.constant 0 : index
    %c0_0 = arith.constant 0 : index
    %0 = vector.load %arg1[%c0, %c0_0] : memref<16x128xf32, #tpu.memory_space<vmem>>, vector<16x128xf32>
    %c0_1 = arith.constant 0 : index
    %c0_2 = arith.constant 0 : index
    %1 = vector.load %arg2[%c0_1, %c0_2] : memref<16x128xf32, #tpu.memory_space<vmem>>, vector<16x128xf32>
    %2 = arith.divf %0, %1 : vector<16x128xf32>
    %3 = arith.divf %2, %2 : vector<16x128xf32>
    %c0_3 = arith.constant 0 : index
    %c0_4 = arith.constant 0 : index
    %4 = vector.load %arg3[%c0_3, %c0_4] : memref<16x128xf32, #tpu.memory_space<vmem>>, vector<16x128xf32>
    tpu.vector_store %arg3[%c0_3, %c0_4], %3 {strides = array<i32>} : memref<16x128xf32, #tpu.memory_space<vmem>>, vector<16x128xf32>,
    return
  }
  func.func @transform_0(%arg0: i32) -> (i32, i32) {
    %c0_i32 = arith.constant 0 : i32
    %c0_i32_0 = arith.constant 0 : i32
    return %arg0, %c0_i32 : i32, i32
  }
  func.func @transform_1(%arg0: i32) -> (i32, i32) {
    %c0_i32 = arith.constant 0 : i32
    %c0_i32_0 = arith.constant 0 : i32
    return %arg0, %c0_i32 : i32, i32
  }
  func.func @transform_2(%arg0: i32) -> (i32, i32) {
    %c0_i32 = arith.constant 0 : i32
    %c0_i32_0 = arith.constant 0 : i32
    return %arg0, %c0_i32 : i32, i32
  }
}

</mosaic_0001>

<llo_original>
// kernel: tpu_custom_call.1
$region0: #{tpu_custom_call.1}
  #allocation0 [shape = 'u32[]', space=smem, size = 0x4, offset = 0x4, fixed_abs, tag = 'smem constant byte address 0x4 - core index']
  #allocation1 [shape = 'u32[144,128]{1,0:T(1,128)}', space=vmem, size = 0x12000, scoped, tag = 'internal scratch']
  %s0 = inlined_call_operand.hbm [shape: f32[16,128], index: 0, kind: input, shape index: {}]
  %s1 = inlined_call_operand.hbm [shape: f32[16,128], index: 1, kind: input, shape index: {}]
  %s2 = inlined_call_operand.hbm [shape: f32[16,128], index: 2, kind: output, shape index: {}]
  %s3 = sld [smem:[#allocation0]]
  $region26: #{tpu_custom_call.1} parent=0
    _
  %s5 = ssub.s32 1, %s3
  %s6 = scalar_select 0, %s5, %s3
  $region1: #{tpu_custom_call.1} parent=0
    #allocation2 [shape = 'u8[8192]{0}', space=vmem, size = 0x2000, scoped, tag = 'input window, operand 0, single buffered']
    #allocation3 [shape = 's32[1]{0}', space=sflag, size = 0x4, scoped, tag = 'scoped memory for tpu_custom_call.1']
    #allocation4 [shape = 's32[1]{0}', space=sflag, size = 0x4, scoped, tag = 'scoped memory for tpu_custom_call.1']
    #allocation5 [shape = 'u8[8192]{0}', space=vmem, size = 0x2000, scoped, tag = 'input window, operand 1, single buffered']
    #allocation6 [shape = 's32[1]{0}', space=sflag, size = 0x4, scoped, tag = 'scoped memory for tpu_custom_call.1']
    #allocation7 [shape = 'u8[8192]{0}', space=vmem, size = 0x2000, scoped, tag = 'output window, operand 0, single buffered']
    %7 = vsyncpa [#allocation3], 0
    %8 = vsyncpa [#allocation6], 0
    %9 = vsyncpa [#allocation4], 0
    // Predicated region
    $region2: #{tpu_custom_call.1} parent=1 // pred_check
      _
    $region3: #{tpu_custom_call.1} parent=1 // pred_check_branch
      %11 = sbr.rel (0) target = $region5
    $region4: #{tpu_custom_call.1} parent=1 // pred_region
      %s13 = ssub.s32 256, 256
      %14 = vsyncadd [#allocation3], %s13
      %s15 = sshll.u32 [#allocation2], 4
      %s16 = int_to_ptr.vmem [resolvable:$true] %s15
      %21 = dma.hbm_to_vmem [thread:$0]  %s0, 256, %s16, [#allocation3], 128, 128, 8
    $region5: #{tpu_custom_call.1} parent=1 // pred_fallthru
      _
    // Predicated region
    $region6: #{tpu_custom_call.1} parent=1 // pred_check
      _
    $region7: #{tpu_custom_call.1} parent=1 // pred_check_branch
      %23 = sbr.rel (0) target = $region9
    $region8: #{tpu_custom_call.1} parent=1 // pred_region
      %s25 = ssub.s32 256, 256
      %26 = vsyncadd [#allocation6], %s25
      %s27 = sshll.u32 [#allocation5], 4
      %s28 = int_to_ptr.vmem [resolvable:$true] %s27
      %33 = dma.hbm_to_vmem [thread:$0]  %s1, 256, %s28, [#allocation6], 128, 128, 8
    $region9: #{tpu_custom_call.1} parent=1 // pred_fallthru
      _
    // Predicated region
    $region10: #{tpu_custom_call.1} parent=1 // pred_check
      _
    $region11: #{tpu_custom_call.1} parent=1 // pred_check_branch
      %35 = sbr.rel (0) target = $region13
    $region12: #{tpu_custom_call.1} parent=1 // pred_region
      %36 = dma.done [#allocation3], 256
    $region13: #{tpu_custom_call.1} parent=1 // pred_fallthru
      _
    // Predicated region
    $region14: #{tpu_custom_call.1} parent=1 // pred_check
      _
    $region15: #{tpu_custom_call.1} parent=1 // pred_check_branch
      %38 = sbr.rel (0) target = $region17
    $region16: #{tpu_custom_call.1} parent=1 // pred_region
      %39 = dma.done [#allocation6], 256
    $region17: #{tpu_custom_call.1} parent=1 // pred_fallthru
      _
    %v40 = vld [vmem:[#allocation2] sm:$0xff]
    %v41 = vld [vmem:[#allocation2 + $0x8] sm:$0xff]
    %v42 = vld [vmem:[#allocation5] sm:$0xff]
    %v43 = vld [vmem:[#allocation5 + $0x8] sm:$0xff]
    %v44 = vrcp.pop %v42
    %v45 = vmul.f32 %v40, %v44
    %v46 = vrcp.pop %v43
    %v47 = vmul.f32 %v41, %v46
    %v48 = vrcp.pop %v45
    %v49 = vmul.f32 %v45, %v48
    %v50 = vrcp.pop %v47
    %v51 = vmul.f32 %v47, %v50
    %52 = vst [vmem:[#allocation7] sm:$0xff] %v49
    %53 = vst [vmem:[#allocation7 + $0x8] sm:$0xff] %v51
    // Predicated region
    $region18: #{tpu_custom_call.1} parent=1 // pred_check
      _
    $region19: #{tpu_custom_call.1} parent=1 // pred_check_branch
      %55 = sbr.rel (0) target = $region21
    $region20: #{tpu_custom_call.1} parent=1 // pred_region
      %s57 = ssub.s32 256, 256
      %58 = vsyncadd [#allocation4], %s57
      %s59 = sshll.u32 [#allocation7], 4
      %s60 = int_to_ptr.vmem [resolvable:$true] %s59
      %65 = dma.vmem_to_hbm [thread:$0]  %s60, 256, %s2, [#allocation4], 128, 128, 8
    $region21: #{tpu_custom_call.1} parent=1 // pred_fallthru
      _
    // Predicated region
    $region22: #{tpu_custom_call.1} parent=1 // pred_check
      _
    $region23: #{tpu_custom_call.1} parent=1 // pred_check_branch
      %67 = sbr.rel (0) target = $region25
    $region24: #{tpu_custom_call.1} parent=1 // pred_region
      %68 = dma.done [#allocation4], 256
    $region25: #{tpu_custom_call.1} parent=1 // pred_fallthru
      _
    %69 = vsyncpa [#allocation3], 1
    %70 = vsyncpa [#allocation6], 1
    %71 = vsyncpa [#allocation4], 1

</llo_original>
